<compile_context>
chip_gen: v5e
topology: v5e:2x2
jax: 0.10.0
libtpu: 0.0.40
codegen_flags: <defaults>
</compile_context>

<pallas_src>
import jax
import jax.numpy as jnp
from jax.experimental import pallas as pl
from jax.experimental.pallas import tpu as pltpu


OUT_LANES = 128  # lane-dense final-layer width; real output is column 0.


# ---------------------------------------------------------------------------
# Kernel
# ---------------------------------------------------------------------------
def make_kernel(hidden_dim):
    H = hidden_dim

    def kernel(x_ref, eW1, eW2, eW3, qW1, qW2, qW3, qW4, b_ref, out_ref):
        def layer(h_bf16, w_ref, b_f32):
            # MXU matmul with f32 accumulation; bias add + ReLU in f32 on the
            # VPU (v5e has no bf16 VPU); store the inter-layer value as bf16.
            acc = jnp.dot(h_bf16, w_ref[...], preferred_element_type=jnp.float32)
            return jnp.maximum(acc + b_f32, 0.0).astype(jnp.bfloat16)

        h = x_ref[...]                                    # (tb, 2*in_pad) bf16
        # Fused block-diagonal encoders (BN folded, Dropout = identity).
        h = layer(h, eW1, b_ref[0:1, 0:2 * H])            # (tb, 2H)
        h = layer(h, eW2, b_ref[1:2, 0:H])                # (tb, H)
        h = layer(h, eW3, b_ref[2:3, 0:H // 2])           # (tb, H/2) = [lig|prot]
        # Predictor (no concat needed: h is already the combined vector).
        h = layer(h, qW1, b_ref[3:4, 0:H])                # (tb, H)
        h = layer(h, qW2, b_ref[4:5, 0:H // 2])           # (tb, H/2)
        h = layer(h, qW3, b_ref[5:6, 0:H // 4])           # (tb, H/4)
        # Final layer, lane-dense (zero-padded to OUT_LANES columns), no ReLU.
        out = jnp.dot(h, qW4[...], preferred_element_type=jnp.float32)
        out = out + b_ref[6:7, 0:OUT_LANES]
        out_ref[...] = out.astype(out_ref.dtype)

    return kernel


# ---------------------------------------------------------------------------
# Parameter construction: xavier_normal_, zero bias, eval-mode BN folded in,
# encoders fused block-diagonally, weights cast to bf16, biases packed.
# ---------------------------------------------------------------------------
def init_params(key, ligand_dim=6, protein_dim=6, hidden_dim=256, bn_eps=1e-5,
                weight_dtype=jnp.bfloat16):
    H = hidden_dim
    in_pad = ((max(ligand_dim, protein_dim) + 7) // 8) * 8  # 6 -> 8

    def xavier_normal(k, fi, fo):
        std = (2.0 / (fi + fo)) ** 0.5
        return std * jax.random.normal(k, (fi, fo), jnp.float32)

    keys = iter(jax.random.split(key, 12))

    def bn_fold(dim):
        # Fresh BatchNorm1d in eval mode: gamma=1, beta=0, mean=0, var=1.
        # TODO(synk): for a trained checkpoint, plug the real running stats here.
        gamma = jnp.ones((dim,), jnp.float32)
        beta = jnp.zeros((dim,), jnp.float32)
        mean = jnp.zeros((dim,), jnp.float32)
        var = jnp.ones((dim,), jnp.float32)
        scale = gamma / jnp.sqrt(var + bn_eps)
        shift = beta - mean * scale
        return scale, shift

    def encoder_branch(in_dim):
        # Linear(in,H)+BN folded, Linear(H,H/2)+BN folded, Linear(H/2,H/4).
        W1 = xavier_normal(next(keys), in_dim, H)
        b1 = jnp.zeros((H,), jnp.float32)
        s1, t1 = bn_fold(H)
        W1, b1 = W1 * s1[None, :], b1 * s1 + t1

        W2 = xavier_normal(next(keys), H, H // 2)
        b2 = jnp.zeros((H // 2,), jnp.float32)
        s2, t2 = bn_fold(H // 2)
        W2, b2 = W2 * s2[None, :], b2 * s2 + t2

        W3 = xavier_normal(next(keys), H // 2, H // 4)
        b3 = jnp.zeros((H // 4,), jnp.float32)
        return W1, b1, W2, b2, W3, b3

    lW1, lb1, lW2, lb2, lW3, lb3 = encoder_branch(ligand_dim)
    pW1, pb1, pW2, pb2, pW3, pb3 = encoder_branch(protein_dim)

    def block_diag(a, b):
        out = jnp.zeros((a.shape[0] + b.shape[0], a.shape[1] + b.shape[1]),
                        jnp.float32)
        out = out.at[:a.shape[0], :a.shape[1]].set(a)
        out = out.at[a.shape[0]:, a.shape[1]:].set(b)
        return out

    # Pad the first-layer input dim of each branch to in_pad (zero rows), then
    # fuse the two encoders block-diagonally.
    lW1p = jnp.zeros((in_pad, H), jnp.float32).at[:ligand_dim].set(lW1)
    pW1p = jnp.zeros((in_pad, H), jnp.float32).at[:protein_dim].set(pW1)
    eW1 = block_diag(lW1p, pW1p)          # (2*in_pad, 2H)
    eW2 = block_diag(lW2, pW2)            # (2H, H)
    eW3 = block_diag(lW3, pW3)            # (H, H//2) -> output = [lig | prot]
    eb1 = jnp.concatenate([lb1, pb1])     # (2H,)
    eb2 = jnp.concatenate([lb2, pb2])     # (H,)
    eb3 = jnp.concatenate([lb3, pb3])     # (H//2,)

    combined_dim = (H // 4) * 2           # == H // 2
    qW1 = xavier_normal(next(keys), combined_dim, H)
    qb1 = jnp.zeros((H,), jnp.float32)
    qW2 = xavier_normal(next(keys), H, H // 2)
    qb2 = jnp.zeros((H // 2,), jnp.float32)
    qW3 = xavier_normal(next(keys), H // 2, H // 4)
    qb3 = jnp.zeros((H // 4,), jnp.float32)
    qW4 = xavier_normal(next(keys), H // 4, 1)
    qb4 = jnp.zeros((1,), jnp.float32)

    # Lane-dense final layer: zero-pad qW4's output dim to OUT_LANES columns.
    qW4p = jnp.zeros((H // 4, OUT_LANES), jnp.float32).at[:, :1].set(qW4)
    qb4p = jnp.zeros((OUT_LANES,), jnp.float32).at[:1].set(qb4)

    # Pack all biases into one (8, 2H) f32 slab (row-per-bias, zero padded).
    bpack = jnp.zeros((8, 2 * H), jnp.float32)
    for i, b in enumerate([eb1, eb2, eb3, qb1, qb2, qb3, qb4p]):
        bpack = bpack.at[i, :b.shape[0]].set(b)

    weights = [w.astype(weight_dtype)
               for w in (eW1, eW2, eW3, qW1, qW2, qW3, qW4p)]
    return weights + [bpack]


# ---------------------------------------------------------------------------
# Tile selection: amortize per-grid-step overhead, keep >= 2 blocks for large
# batches so v7x's two TensorCores both get work, round to 16 for bf16 x.
# ---------------------------------------------------------------------------
def _round_up(x, m):
    return ((x + m - 1) // m) * m


def _pick_tile(B, max_tile=2048):
    if B <= 1024:
        return _round_up(B, 16)
    if B <= 2 * max_tile:
        # Split into (at least) 2 blocks so both v7x TensorCores get a block.
        return _round_up((B + 1) // 2, 256)
    return max_tile


# ---------------------------------------------------------------------------
# Wrapper
# ---------------------------------------------------------------------------
def scaled_robust_gnn_forward(ligand_features, protein_features, params,
                              hidden_dim=256):
    eW1, eW2, eW3, qW1, qW2, qW3, qW4, bpack = params
    B = ligand_features.shape[0]
    in_pad = eW1.shape[0] // 2

    # Pad each branch's feature dim to in_pad and concatenate in the wrapper
    # (layout plumbing outside the kernel); cast to bf16 here (kernel consumes
    # bf16 directly, halves the per-step input DMA).
    x = jnp.concatenate([
        jnp.pad(ligand_features.astype(jnp.float32),
                ((0, 0), (0, in_pad - ligand_features.shape[1]))),
        jnp.pad(protein_features.astype(jnp.float32),
                ((0, 0), (0, in_pad - protein_features.shape[1]))),
    ], axis=-1).astype(jnp.bfloat16)
    K = x.shape[1]

    tb = _pick_tile(B)
    n_blocks = pl.cdiv(B, tb)
    B_pad = n_blocks * tb
    if B_pad != B:
        x = jnp.pad(x, ((0, B_pad - B), (0, 0)))

    weight_args = (eW1, eW2, eW3, qW1, qW2, qW3, qW4, bpack)
    # Constant index maps -> weights stay resident in VMEM across grid steps.
    weight_specs = [pl.BlockSpec(w.shape, lambda i: (0, 0)) for w in weight_args]

    out = pl.pallas_call(
        make_kernel(hidden_dim),
        out_shape=jax.ShapeDtypeStruct((B_pad, OUT_LANES), jnp.float32),
        grid=(n_blocks,),
        in_specs=[pl.BlockSpec((tb, K), lambda i: (i, 0))] + weight_specs,
        out_specs=pl.BlockSpec((tb, OUT_LANES), lambda i: (i, 0)),
        compiler_params=pltpu.CompilerParams(
            dimension_semantics=("parallel",)),
    )(x, *weight_args)
    return out[:B, :1]


# Pure-JAX reference mirroring the kernel math (for a sanity check).
def reference_forward(ligand_features, protein_features, params, hidden_dim=256):
    eW1, eW2, eW3, qW1, qW2, qW3, qW4, bpack = params
    H = hidden_dim
    in_pad = eW1.shape[0] // 2
    x = jnp.concatenate([
        jnp.pad(ligand_features.astype(jnp.float32),
                ((0, 0), (0, in_pad - ligand_features.shape[1]))),
        jnp.pad(protein_features.astype(jnp.float32),
                ((0, 0), (0, in_pad - protein_features.shape[1]))),
    ], axis=-1).astype(jnp.bfloat16)

    def layer(h, w, b):
        acc = jnp.dot(h, w, preferred_element_type=jnp.float32) + b
        return jnp.maximum(acc, 0.0).astype(jnp.bfloat16)

    widths = [2 * H, H, H // 2, H, H // 2, H // 4, OUT_LANES]
    bs = [bpack[i, :w] for i, w in enumerate(widths)]
    h = layer(x, eW1, bs[0])
    h = layer(h, eW2, bs[1])
    h = layer(h, eW3, bs[2])
    h = layer(h, qW1, bs[3])
    h = layer(h, qW2, bs[4])
    h = layer(h, qW3, bs[5])
    out = jnp.dot(h, qW4, preferred_element_type=jnp.float32) + bs[6]
    return out[:, :1]


if __name__ == "__main__":
    key = jax.random.PRNGKey(0)
    k_lig, k_prot, k_params = jax.random.split(key, 3)

    batch = 8
    ligand_dim = 6
    protein_dim = 6
    hidden_dim = 256

    ligand = jax.random.normal(k_lig, (batch, ligand_dim), jnp.float32)
    protein = jax.random.normal(k_prot, (batch, protein_dim), jnp.float32)

    params = init_params(k_params, ligand_dim, protein_dim, hidden_dim)

    out = scaled_robust_gnn_forward(ligand, protein, params, hidden_dim)
    out = jax.block_until_ready(out)
    assert out.shape == (batch, 1)

    ref = jax.block_until_ready(
        reference_forward(ligand, protein, params, hidden_dim))
    assert jnp.allclose(out, ref, atol=1e-1, rtol=1e-1)

    print("KERNEL_OK")
</pallas_src>

<mosaic_0001>
module attributes {stable_mosaic.version = 11 : i64} {
  func.func @kernel(%arg0: i32, %arg1: memref<16x16xbf16, #tpu.memory_space<vmem>>, %arg2: memref<16x512xbf16, #tpu.memory_space<vmem>>, %arg3: memref<512x256xbf16, #tpu.memory_space<vmem>>, %arg4: memref<256x128xbf16, #tpu.memory_space<vmem>>, %arg5: memref<128x256xbf16, #tpu.memory_space<vmem>>, %arg6: memref<256x128xbf16, #tpu.memory_space<vmem>>, %arg7: memref<128x64xbf16, #tpu.memory_space<vmem>>, %arg8: memref<64x128xbf16, #tpu.memory_space<vmem>>, %arg9: memref<8x512xf32, #tpu.memory_space<vmem>>, %arg10: memref<16x128xf32, #tpu.memory_space<vmem>>) attributes {dimension_semantics = [#tpu.dimension_semantics<parallel>], iteration_bounds = array<i64: 1>, scalar_prefetch = 0 : i64, scratch_operands = 0 : i64, tpu.core_type = #tpu.core_type<tc>, window_params = [{transform_indices = @transform_0, window_bounds = array<i64: 16, 16>}, {pipeline_mode = #tpu.pipeline_mode<synchronous>, transform_indices = @transform_1, window_bounds = array<i64: 16, 512>}, {pipeline_mode = #tpu.pipeline_mode<synchronous>, transform_indices = @transform_2, window_bounds = array<i64: 512, 256>}, {pipeline_mode = #tpu.pipeline_mode<synchronous>, transform_indices = @transform_3, window_bounds = array<i64: 256, 128>}, {pipeline_mode = #tpu.pipeline_mode<synchronous>, transform_indices = @transform_4, window_bounds = array<i64: 128, 256>}, {pipeline_mode = #tpu.pipeline_mode<synchronous>, transform_indices = @transform_5, window_bounds = array<i64: 256, 128>}, {pipeline_mode = #tpu.pipeline_mode<synchronous>, transform_indices = @transform_6, window_bounds = array<i64: 128, 64>}, {pipeline_mode = #tpu.pipeline_mode<synchronous>, transform_indices = @transform_7, window_bounds = array<i64: 64, 128>}, {pipeline_mode = #tpu.pipeline_mode<synchronous>, transform_indices = @transform_8, window_bounds = array<i64: 8, 512>}, {transform_indices = @transform_9, window_bounds = array<i64: 16, 128>}]} {
    %c0 = arith.constant 0 : index
    %c0_0 = arith.constant 0 : index
    %0 = vector.load %arg1[%c0, %c0_0] : memref<16x16xbf16, #tpu.memory_space<vmem>>, vector<16x16xbf16>
    %c0_1 = arith.constant 0 : index
    %c0_2 = arith.constant 0 : index
    %1 = vector.load %arg9[%c0_1, %c0_2] : memref<8x512xf32, #tpu.memory_space<vmem>>, vector<1x512xf32>
    %c0_3 = arith.constant 0 : index
    %c0_4 = arith.constant 0 : index
    %2 = vector.load %arg2[%c0_3, %c0_4] : memref<16x512xbf16, #tpu.memory_space<vmem>>, vector<16x512xbf16>
    %cst = arith.constant dense<0.000000e+00> : vector<16x512xf32>
    %3 = tpu.matmul %0, %2, %cst {dimension_numbers = #tpu.dot_dimension_numbers<[1], [0], [0], [1], [0, 0, 1, 1], [], []>} : vector<16x16xbf16>, vector<16x512xbf16>, vector<16x512xf32> -> vector<16x512xf32>
    %4 = vector.broadcast %1 : vector<1x512xf32> to vector<16x512xf32>
    %5 = arith.addf %3, %4 : vector<16x512xf32>
    %cst_5 = arith.constant 0.000000e+00 : f32
    %6 = vector.broadcast %cst_5 : f32 to vector<16x512xf32>
    %7 = arith.maximumf %5, %6 : vector<16x512xf32>
    %8 = arith.truncf %7 : vector<16x512xf32> to vector<16x512xbf16>
    %c1 = arith.constant 1 : index
    %c0_6 = arith.constant 0 : index
    %9 = vector.load %arg9[%c1, %c0_6] : memref<8x512xf32, #tpu.memory_space<vmem>>, vector<1x256xf32>
    %c0_7 = arith.constant 0 : index
    %c0_8 = arith.constant 0 : index
    %10 = vector.load %arg3[%c0_7, %c0_8] : memref<512x256xbf16, #tpu.memory_space<vmem>>, vector<512x256xbf16>
    %cst_9 = arith.constant dense<0.000000e+00> : vector<16x256xf32>
    %11 = tpu.matmul %8, %10, %cst_9 {dimension_numbers = #tpu.dot_dimension_numbers<[1], [0], [0], [1], [0, 0, 1, 1], [], []>} : vector<16x512xbf16>, vector<512x256xbf16>, vector<16x256xf32> -> vector<16x256xf32>
    %12 = vector.broadcast %9 : vector<1x256xf32> to vector<16x256xf32>
    %13 = arith.addf %11, %12 : vector<16x256xf32>
    %cst_10 = arith.constant 0.000000e+00 : f32
    %14 = vector.broadcast %cst_10 : f32 to vector<16x256xf32>
    %15 = arith.maximumf %13, %14 : vector<16x256xf32>
    %16 = arith.truncf %15 : vector<16x256xf32> to vector<16x256xbf16>
    %c2 = arith.constant 2 : index
    %c0_11 = arith.constant 0 : index
    %17 = vector.load %arg9[%c2, %c0_11] : memref<8x512xf32, #tpu.memory_space<vmem>>, vector<1x128xf32>
    %c0_12 = arith.constant 0 : index
    %c0_13 = arith.constant 0 : index
    %18 = vector.load %arg4[%c0_12, %c0_13] : memref<256x128xbf16, #tpu.memory_space<vmem>>, vector<256x128xbf16>
    %cst_14 = arith.constant dense<0.000000e+00> : vector<16x128xf32>
    %19 = tpu.matmul %16, %18, %cst_14 {dimension_numbers = #tpu.dot_dimension_numbers<[1], [0], [0], [1], [0, 0, 1, 1], [], []>} : vector<16x256xbf16>, vector<256x128xbf16>, vector<16x128xf32> -> vector<16x128xf32>
    %20 = vector.broadcast %17 : vector<1x128xf32> to vector<16x128xf32>
    %21 = arith.addf %19, %20 : vector<16x128xf32>
    %cst_15 = arith.constant 0.000000e+00 : f32
    %22 = vector.broadcast %cst_15 : f32 to vector<16x128xf32>
    %23 = arith.maximumf %21, %22 : vector<16x128xf32>
    %24 = arith.truncf %23 : vector<16x128xf32> to vector<16x128xbf16>
    %c3 = arith.constant 3 : index
    %c0_16 = arith.constant 0 : index
    %25 = vector.load %arg9[%c3, %c0_16] : memref<8x512xf32, #tpu.memory_space<vmem>>, vector<1x256xf32>
    %c0_17 = arith.constant 0 : index
    %c0_18 = arith.constant 0 : index
    %26 = vector.load %arg5[%c0_17, %c0_18] : memref<128x256xbf16, #tpu.memory_space<vmem>>, vector<128x256xbf16>
    %cst_19 = arith.constant dense<0.000000e+00> : vector<16x256xf32>
    %27 = tpu.matmul %24, %26, %cst_19 {dimension_numbers = #tpu.dot_dimension_numbers<[1], [0], [0], [1], [0, 0, 1, 1], [], []>} : vector<16x128xbf16>, vector<128x256xbf16>, vector<16x256xf32> -> vector<16x256xf32>
    %28 = vector.broadcast %25 : vector<1x256xf32> to vector<16x256xf32>
    %29 = arith.addf %27, %28 : vector<16x256xf32>
    %cst_20 = arith.constant 0.000000e+00 : f32
    %30 = vector.broadcast %cst_20 : f32 to vector<16x256xf32>
    %31 = arith.maximumf %29, %30 : vector<16x256xf32>
    %32 = arith.truncf %31 : vector<16x256xf32> to vector<16x256xbf16>
    %c4 = arith.constant 4 : index
    %c0_21 = arith.constant 0 : index
    %33 = vector.load %arg9[%c4, %c0_21] : memref<8x512xf32, #tpu.memory_space<vmem>>, vector<1x128xf32>
    %c0_22 = arith.constant 0 : index
    %c0_23 = arith.constant 0 : index
    %34 = vector.load %arg6[%c0_22, %c0_23] : memref<256x128xbf16, #tpu.memory_space<vmem>>, vector<256x128xbf16>
    %cst_24 = arith.constant dense<0.000000e+00> : vector<16x128xf32>
    %35 = tpu.matmul %32, %34, %cst_24 {dimension_numbers = #tpu.dot_dimension_numbers<[1], [0], [0], [1], [0, 0, 1, 1], [], []>} : vector<16x256xbf16>, vector<256x128xbf16>, vector<16x128xf32> -> vector<16x128xf32>
    %36 = vector.broadcast %33 : vector<1x128xf32> to vector<16x128xf32>
    %37 = arith.addf %35, %36 : vector<16x128xf32>
    %cst_25 = arith.constant 0.000000e+00 : f32
    %38 = vector.broadcast %cst_25 : f32 to vector<16x128xf32>
    %39 = arith.maximumf %37, %38 : vector<16x128xf32>
    %40 = arith.truncf %39 : vector<16x128xf32> to vector<16x128xbf16>
    %c5 = arith.constant 5 : index
    %c0_26 = arith.constant 0 : index
    %41 = vector.load %arg9[%c5, %c0_26] : memref<8x512xf32, #tpu.memory_space<vmem>>, vector<1x64xf32>
    %c0_27 = arith.constant 0 : index
    %c0_28 = arith.constant 0 : index
    %42 = vector.load %arg7[%c0_27, %c0_28] : memref<128x64xbf16, #tpu.memory_space<vmem>>, vector<128x64xbf16>
    %cst_29 = arith.constant dense<0.000000e+00> : vector<16x64xf32>
    %43 = tpu.matmul %40, %42, %cst_29 {dimension_numbers = #tpu.dot_dimension_numbers<[1], [0], [0], [1], [0, 0, 1, 1], [], []>} : vector<16x128xbf16>, vector<128x64xbf16>, vector<16x64xf32> -> vector<16x64xf32>
    %44 = vector.broadcast %41 : vector<1x64xf32> to vector<16x64xf32>
    %45 = arith.addf %43, %44 : vector<16x64xf32>
    %cst_30 = arith.constant 0.000000e+00 : f32
    %46 = vector.broadcast %cst_30 : f32 to vector<16x64xf32>
    %47 = arith.maximumf %45, %46 : vector<16x64xf32>
    %48 = arith.truncf %47 : vector<16x64xf32> to vector<16x64xbf16>
    %c0_31 = arith.constant 0 : index
    %c0_32 = arith.constant 0 : index
    %49 = vector.load %arg8[%c0_31, %c0_32] : memref<64x128xbf16, #tpu.memory_space<vmem>>, vector<64x128xbf16>
    %cst_33 = arith.constant dense<0.000000e+00> : vector<16x128xf32>
    %50 = tpu.matmul %48, %49, %cst_33 {dimension_numbers = #tpu.dot_dimension_numbers<[1], [0], [0], [1], [0, 0, 1, 1], [], []>} : vector<16x64xbf16>, vector<64x128xbf16>, vector<16x128xf32> -> vector<16x128xf32>
    %c6 = arith.constant 6 : index
    %c0_34 = arith.constant 0 : index
    %51 = vector.load %arg9[%c6, %c0_34] : memref<8x512xf32, #tpu.memory_space<vmem>>, vector<1x128xf32>
    %52 = vector.broadcast %51 : vector<1x128xf32> to vector<16x128xf32>
    %53 = arith.addf %50, %52 : vector<16x128xf32>
    %c0_35 = arith.constant 0 : index
    %c0_36 = arith.constant 0 : index
    %54 = vector.load %arg10[%c0_35, %c0_36] : memref<16x128xf32, #tpu.memory_space<vmem>>, vector<16x128xf32>
    tpu.vector_store %arg10[%c0_35, %c0_36], %53 {strides = array<i32>} : memref<16x128xf32, #tpu.memory_space<vmem>>, vector<16x128xf32>,
    return
  }
  func.func @transform_0(%arg0: i32) -> (i32, i32) {
    %c0_i32 = arith.constant 0 : i32
    %c0_i32_0 = arith.constant 0 : i32
    return %arg0, %c0_i32 : i32, i32
  }
  func.func @transform_1(%arg0: i32) -> (i32, i32) {
    %c0_i32 = arith.constant 0 : i32
    %c0_i32_0 = arith.constant 0 : i32
    %c0_i32_1 = arith.constant 0 : i32
    return %c0_i32, %c0_i32_0 : i32, i32
  }
  func.func @transform_2(%arg0: i32) -> (i32, i32) {
    %c0_i32 = arith.constant 0 : i32
    %c0_i32_0 = arith.constant 0 : i32
    %c0_i32_1 = arith.constant 0 : i32
    return %c0_i32, %c0_i32_0 : i32, i32
  }
  func.func @transform_3(%arg0: i32) -> (i32, i32) {
    %c0_i32 = arith.constant 0 : i32
    %c0_i32_0 = arith.constant 0 : i32
    %c0_i32_1 = arith.constant 0 : i32
    return %c0_i32, %c0_i32_0 : i32, i32
  }
  func.func @transform_4(%arg0: i32) -> (i32, i32) {
    %c0_i32 = arith.constant 0 : i32
    %c0_i32_0 = arith.constant 0 : i32
    %c0_i32_1 = arith.constant 0 : i32
    return %c0_i32, %c0_i32_0 : i32, i32
  }
  func.func @transform_5(%arg0: i32) -> (i32, i32) {
    %c0_i32 = arith.constant 0 : i32
    %c0_i32_0 = arith.constant 0 : i32
    %c0_i32_1 = arith.constant 0 : i32
    return %c0_i32, %c0_i32_0 : i32, i32
  }
  func.func @transform_6(%arg0: i32) -> (i32, i32) {
    %c0_i32 = arith.constant 0 : i32
    %c0_i32_0 = arith.constant 0 : i32
    %c0_i32_1 = arith.constant 0 : i32
    return %c0_i32, %c0_i32_0 : i32, i32
  }
  func.func @transform_7(%arg0: i32) -> (i32, i32) {
    %c0_i32 = arith.constant 0 : i32
    %c0_i32_0 = arith.constant 0 : i32
    %c0_i32_1 = arith.constant 0 : i32
    return %c0_i32, %c0_i32_0 : i32, i32
  }
  func.func @transform_8(%arg0: i32) -> (i32, i32) {
    %c0_i32 = arith.constant 0 : i32
    %c0_i32_0 = arith.constant 0 : i32
    %c0_i32_1 = arith.constant 0 : i32
    return %c0_i32, %c0_i32_0 : i32, i32
  }
  func.func @transform_9(%arg0: i32) -> (i32, i32) {
    %c0_i32 = arith.constant 0 : i32
    %c0_i32_0 = arith.constant 0 : i32
    return %arg0, %c0_i32 : i32, i32
  }
}

</mosaic_0001>

<llo_original>
// kernel: tpu_custom_call.1
$region0: #{tpu_custom_call.1}
  #allocation0 [shape = 'u32[]', space=smem, size = 0x4, offset = 0x4, fixed_abs, tag = 'smem constant byte address 0x4 - core index']
  #allocation1 [shape = 'u32[72,128]{1,0:T(1,128)}', space=vmem, size = 0x9000, scoped, tag = 'internal scratch']
  %s0 = inlined_call_operand.hbm [shape: bf16[16,16], index: 0, kind: input, shape index: {}]
  %s1 = inlined_call_operand.vmem [shape: bf16[16,512], index: 1, kind: input, shape index: {}]
  %s2 = inlined_call_operand.hbm [shape: bf16[512,256], index: 2, kind: input, shape index: {}]
  %s3 = inlined_call_operand.hbm [shape: bf16[256,128], index: 3, kind: input, shape index: {}]
  %s4 = inlined_call_operand.hbm [shape: bf16[128,256], index: 4, kind: input, shape index: {}]
  %s5 = inlined_call_operand.hbm [shape: bf16[256,128], index: 5, kind: input, shape index: {}]
  %s6 = inlined_call_operand.vmem [shape: bf16[128,64], index: 6, kind: input, shape index: {}]
  %s7 = inlined_call_operand.vmem [shape: bf16[64,128], index: 7, kind: input, shape index: {}]
  %s8 = inlined_call_operand.vmem [shape: f32[8,512], index: 8, kind: input, shape index: {}]
  %s9 = inlined_call_operand.hbm [shape: f32[16,128], index: 9, kind: output, shape index: {}]
  %s10 = sld [smem:[#allocation0]]
  $region66: #{tpu_custom_call.1} parent=0
    _
  %s12 = ssub.s32 1, %s10
  %s13 = scalar_select 0, %s12, %s10
  $region1: #{tpu_custom_call.1} parent=0
    #allocation2 [shape = 'u8[4096]{0}', space=vmem, size = 0x1000, scoped, tag = 'input window, operand 0, single buffered']
    #allocation3 [shape = 's32[1]{0}', space=sflag, size = 0x4, scoped, tag = 'scoped memory for tpu_custom_call.1']
    #allocation4 [shape = 's32[1]{0}', space=sflag, size = 0x4, scoped, tag = 'scoped memory for tpu_custom_call.1']
    #allocation5 [shape = 'u8[262144]{0}', space=vmem, size = 0x40000, scoped, tag = 'input window, operand 2, single buffered']
    #allocation6 [shape = 's32[1]{0}', space=sflag, size = 0x4, scoped, tag = 'scoped memory for tpu_custom_call.1']
    #allocation7 [shape = 'u8[65536]{0}', space=vmem, size = 0x10000, scoped, tag = 'input window, operand 3, single buffered']
    #allocation8 [shape = 'u8[65536]{0}', space=vmem, size = 0x10000, scoped, tag = 'input window, operand 4, single buffered']
    #allocation9 [shape = 's32[1]{0}', space=sflag, size = 0x4, scoped, tag = 'scoped memory for tpu_custom_call.1']
    #allocation10 [shape = 'u8[65536]{0}', space=vmem, size = 0x10000, scoped, tag = 'input window, operand 5, single buffered']
    #allocation11 [shape = 'u8[8192]{0}', space=vmem, size = 0x2000, scoped, tag = 'output window, operand 0, single buffered']
    %14 = vsyncpa [#allocation3], 0
    %15 = vsyncpa [#allocation6], 0
    %16 = vsyncpa [#allocation9], 0
    %17 = vsyncpa [#allocation4], 0
    // Predicated region
    $region2: #{tpu_custom_call.1} parent=1 // pred_check
      _
    $region3: #{tpu_custom_call.1} parent=1 // pred_check_branch
      %19 = sbr.rel (0) target = $region5
    $region4: #{tpu_custom_call.1} parent=1 // pred_region
      %21 = vsyncadd [#allocation3], 0
      %s22 = sshll.u32 %s0, 4
      %s23 = int_to_ptr.hbm [resolvable:$true] %s22
      %s24 = sshll.u32 [#allocation2], 4
      %s25 = int_to_ptr.vmem [resolvable:$true] %s24
      %30 = dma.hbm_to_vmem [thread:$0]  %s23, 128, %s25, [#allocation3], 64, 64, 4
    $region5: #{tpu_custom_call.1} parent=1 // pred_fallthru
      _
    // Predicated region
    $region6: #{tpu_custom_call.1} parent=1 // pred_check
      _
    $region7: #{tpu_custom_call.1} parent=1 // pred_check_branch
      %32 = sbr.rel (0) target = $region9
    $region8: #{tpu_custom_call.1} parent=1 // pred_region
      _
    $region9: #{tpu_custom_call.1} parent=1 // pred_fallthru
      _
    // Predicated region
    $region10: #{tpu_custom_call.1} parent=1 // pred_check
      _
    $region11: #{tpu_custom_call.1} parent=1 // pred_check_branch
      %34 = sbr.rel (0) target = $region13
    $region12: #{tpu_custom_call.1} parent=1 // pred_region
      %36 = vsyncadd [#allocation6], 0
      %s37 = sshll.u32 %s2, 4
      %s38 = int_to_ptr.hbm [resolvable:$true] %s37
      %s39 = sshll.u32 [#allocation5], 4
      %s40 = int_to_ptr.vmem [resolvable:$true] %s39
      %45 = dma.hbm_to_vmem [thread:$0]  %s38, 8192, %s40, [#allocation6], 128, 128, 8
    $region13: #{tpu_custom_call.1} parent=1 // pred_fallthru
      _
    // Predicated region
    $region14: #{tpu_custom_call.1} parent=1 // pred_check
      _
    $region15: #{tpu_custom_call.1} parent=1 // pred_check_branch
      %47 = sbr.rel (0) target = $region17
    $region16: #{tpu_custom_call.1} parent=1 // pred_region
      %49 = vsyncadd [#allocation6], 0
      %s50 = sshll.u32 %s3, 4
      %s51 = int_to_ptr.hbm [resolvable:$true] %s50
      %s52 = sshll.u32 [#allocation7], 4
      %s53 = int_to_ptr.vmem [resolvable:$true] %s52
      %58 = dma.hbm_to_vmem [thread:$0]  %s51, 2048, %s53, [#allocation6], 64, 64, 4
    $region17: #{tpu_custom_call.1} parent=1 // pred_fallthru
      _
    // Predicated region
    $region18: #{tpu_custom_call.1} parent=1 // pred_check
      _
    $region19: #{tpu_custom_call.1} parent=1 // pred_check_branch
      %60 = sbr.rel (0) target = $region21
    $region20: #{tpu_custom_call.1} parent=1 // pred_region
      %62 = vsyncadd [#allocation9], 0
      %s63 = sshll.u32 %s4, 4
      %s64 = int_to_ptr.hbm [resolvable:$true] %s63
      %s65 = sshll.u32 [#allocation8], 4
      %s66 = int_to_ptr.vmem [resolvable:$true] %s65
      %71 = dma.hbm_to_vmem [thread:$0]  %s64, 2048, %s66, [#allocation9], 128, 128, 8
    $region21: #{tpu_custom_call.1} parent=1 // pred_fallthru
      _
    // Predicated region
    $region22: #{tpu_custom_call.1} parent=1 // pred_check
      _
    $region23: #{tpu_custom_call.1} parent=1 // pred_check_branch
      %73 = sbr.rel (0) target = $region25
    $region24: #{tpu_custom_call.1} parent=1 // pred_region
      %75 = vsyncadd [#allocation9], 0
      %s76 = sshll.u32 %s5, 4
      %s77 = int_to_ptr.hbm [resolvable:$true] %s76
      %s78 = sshll.u32 [#allocation10], 4
      %s79 = int_to_ptr.vmem [resolvable:$true] %s78
      %84 = dma.hbm_to_vmem [thread:$0]  %s77, 2048, %s79, [#allocation9], 64, 64, 4
    $region25: #{tpu_custom_call.1} parent=1 // pred_fallthru
      _
    // Predicated region
    $region26: #{tpu_custom_call.1} parent=1 // pred_check
      _
    $region27: #{tpu_custom_call.1} parent=1 // pred_check_branch
      %86 = sbr.rel (0) target = $region29
    $region28: #{tpu_custom_call.1} parent=1 // pred_region
      _
    $region29: #{tpu_custom_call.1} parent=1 // pred_fallthru
      _
    // Predicated region
    $region30: #{tpu_custom_call.1} parent=1 // pred_check
      _
    $region31: #{tpu_custom_call.1} parent=1 // pred_check_branch
      %88 = sbr.rel (0) target = $region33
    $region32: #{tpu_custom_call.1} parent=1 // pred_region
      _
    $region33: #{tpu_custom_call.1} parent=1 // pred_fallthru
      _
    // Predicated region
    $region34: #{tpu_custom_call.1} parent=1 // pred_check
      _
    $region35: #{tpu_custom_call.1} parent=1 // pred_check_branch
      %90 = sbr.rel (0) target = $region37
    $region36: #{tpu_custom_call.1} parent=1 // pred_region
      _
    $region37: #{tpu_custom_call.1} parent=1 // pred_fallthru
      _
    // Predicated region
    $region38: #{tpu_custom_call.1} parent=1 // pred_check
      _
    $region39: #{tpu_custom_call.1} parent=1 // pred_check_branch
      %92 = sbr.rel (0) target = $region41
    $region40: #{tpu_custom_call.1} parent=1 // pred_region
      %94 = dma.done [#allocation3], 128
    $region41: #{tpu_custom_call.1} parent=1 // pred_fallthru
      _
    // Predicated region
    $region42: #{tpu_custom_call.1} parent=1 // pred_check
      _
    $region43: #{tpu_custom_call.1} parent=1 // pred_check_branch
      %96 = sbr.rel (0) target = $region45
    $region44: #{tpu_custom_call.1} parent=1 // pred_region
      %98 = dma.done [#allocation6], 8192
    $region45: #{tpu_custom_call.1} parent=1 // pred_fallthru
      _
    // Predicated region
    $region46: #{tpu_custom_call.1} parent=1 // pred_check
      _
    $region47: #{tpu_custom_call.1} parent=1 // pred_check_branch
      %100 = sbr.rel (0) target = $region49
    $region48: #{tpu_custom_call.1} parent=1 // pred_region
      %102 = dma.done [#allocation6], 2048
    $region49: #{tpu_custom_call.1} parent=1 // pred_fallthru
      _
    // Predicated region
    $region50: #{tpu_custom_call.1} parent=1 // pred_check
      _
    $region51: #{tpu_custom_call.1} parent=1 // pred_check_branch
      %104 = sbr.rel (0) target = $region53
    $region52: #{tpu_custom_call.1} parent=1 // pred_region
      %106 = dma.done [#allocation9], 2048
    $region53: #{tpu_custom_call.1} parent=1 // pred_fallthru
      _
    // Predicated region
    $region54: #{tpu_custom_call.1} parent=1 // pred_check
      _
    $region55: #{tpu_custom_call.1} parent=1 // pred_check_branch
      %108 = sbr.rel (0) target = $region57
    $region56: #{tpu_custom_call.1} parent=1 // pred_region
      %110 = dma.done [#allocation9], 2048
    $region57: #{tpu_custom_call.1} parent=1 // pred_fallthru
      _
    %v112 = vld [vmem:[#allocation2] sm:$0xf]
    %v113 = vld [vmem:[#allocation2 + $0x4] sm:$0xf]
    %v114 = vld [vmem:[%s8] ss:$8 sm:$0xf]
    %v115 = vld [vmem:[%s1] sm:$0xff]
    %v116 = vld [vmem:[%s1 + $0x8] sm:$0xff]
    %v117 = vld [vmem:[%s1 + $0x10] sm:$0xff]
    %v118 = vld [vmem:[%s1 + $0x18] sm:$0xff]
    %v120 = vperm.slane %v114, 0
    %v121 = vperm.slane %v114, 1
    %v122 = vperm.slane %v114, 2
    %v123 = vperm.slane %v114, 3
    %v130 = vunpack.c.l.b16 %v112
    %v131 = vunpack.c.l.b16 %v113
    %v132 = vpack.c.b16 %v131, %v130
    %v137 = vunpack.c.l.b16 %v115
    %v138 = vunpack.c.h.b16 %v115
    %v139 = vunpack.c.l.b16 %v116
    %v140 = vunpack.c.h.b16 %v116
    %v141 = vunpack.c.l.b16 %v117
    %v142 = vunpack.c.h.b16 %v117
    %v143 = vunpack.c.l.b16 %v118
    %v144 = vunpack.c.h.b16 %v118
    %v145 = vpack.c.b16 %v141, %v137
    %v146 = vpack.c.b16 %v142, %v138
    %v147 = vpack.c.b16 %v143, %v139
    %v148 = vpack.c.b16 %v144, %v140
    %vm153 = vcmask 130048
    %v155 = vsel %vm153, %v132, 0
    %157 = vmatpush.bf16.msra.mxu0 0
    %158 = vmatpush.bf16.msra.mxu0 0
    %159 = vmatpush.bf16.msra.mxu0 0
    %160 = vmatpush.bf16.msra.mxu0 0
    %161 = vmatpush.bf16.msra.mxu0 0
    %162 = vmatpush.bf16.msra.mxu0 0
    %163 = vmatpush.bf16.msra.mxu0 0
    %164 = vmatpush.bf16.msra.mxu0 %v145
    %165 = vmatmul.bf16.gmra.mxu0 %v155
    %v166 = vpop.f32.mrf.mxu0
    %v167 = vadd.f32 %v120, %v166
    %v168 = vpop.f32.mrf.mxu0
    %v169 = vadd.f32 %v120, %v168
    %170 = vdwg.mxu0
    %171 = vmatpush.bf16.msra.mxu0 0
    %172 = vmatpush.bf16.msra.mxu0 0
    %173 = vmatpush.bf16.msra.mxu0 0
    %174 = vmatpush.bf16.msra.mxu0 0
    %175 = vmatpush.bf16.msra.mxu0 0
    %176 = vmatpush.bf16.msra.mxu0 0
    %177 = vmatpush.bf16.msra.mxu0 0
    %178 = vmatpush.bf16.msra.mxu0 %v146
    %179 = vmatmul.bf16.gmra.mxu0 %v155
    %v180 = vpop.f32.mrf.mxu0
    %v181 = vadd.f32 %v121, %v180
    %v182 = vpop.f32.mrf.mxu0
    %v183 = vadd.f32 %v121, %v182
    %184 = vdwg.mxu0
    %185 = vmatpush.bf16.msra.mxu0 0
    %186 = vmatpush.bf16.msra.mxu0 0
    %187 = vmatpush.bf16.msra.mxu0 0
    %188 = vmatpush.bf16.msra.mxu0 0
    %189 = vmatpush.bf16.msra.mxu0 0
    %190 = vmatpush.bf16.msra.mxu0 0
    %191 = vmatpush.bf16.msra.mxu0 0
    %192 = vmatpush.bf16.msra.mxu0 %v147
    %193 = vmatmul.bf16.gmra.mxu0 %v155
    %v194 = vpop.f32.mrf.mxu0
    %v195 = vadd.f32 %v122, %v194
    %v196 = vpop.f32.mrf.mxu0
    %v197 = vadd.f32 %v122, %v196
    %198 = vdwg.mxu0
    %199 = vmatpush.bf16.msra.mxu0 0
    %200 = vmatpush.bf16.msra.mxu0 0
    %201 = vmatpush.bf16.msra.mxu0 0
    %202 = vmatpush.bf16.msra.mxu0 0
    %203 = vmatpush.bf16.msra.mxu0 0
    %204 = vmatpush.bf16.msra.mxu0 0
    %205 = vmatpush.bf16.msra.mxu0 0
    %206 = vmatpush.bf16.msra.mxu0 %v148
    %207 = vmatmul.bf16.gmra.mxu0 %v155
    %v208 = vpop.f32.mrf.mxu0
    %v209 = vadd.f32 %v123, %v208
    %v210 = vpop.f32.mrf.mxu0
    %v211 = vadd.f32 %v123, %v210
    %212 = vdwg.mxu0
    %v213 = vmax.f32 %v167, 0.0
    %v214 = vmax.f32 %v181, 0.0
    %v215 = vmax.f32 %v195, 0.0
    %v216 = vmax.f32 %v209, 0.0
    %v217 = vmax.f32 %v169, 0.0
    %v218 = vmax.f32 %v183, 0.0
    %v219 = vmax.f32 %v197, 0.0
    %v220 = vmax.f32 %v211, 0.0
    %v221 = vpack.c.bf16 %v217, %v213
    %v222 = vpack.c.bf16 %v218, %v214
    %v223 = vpack.c.bf16 %v219, %v215
    %v224 = vpack.c.bf16 %v220, %v216
    %s225 = scalar_lea.vmem %s8, 1
    %v226 = vld [vmem:[%s225] ss:$8 sm:$0x3]
    %v227 = vld [vmem:[#allocation5] sm:$0xff]
    %v228 = vld [vmem:[#allocation5 + $0x8] sm:$0xff]
    %v229 = vld [vmem:[#allocation5 + $0x10] sm:$0xff]
    %v230 = vld [vmem:[#allocation5 + $0x18] sm:$0xff]
    %v231 = vld [vmem:[#allocation5 + $0x20] sm:$0xff]
    %v232 = vld [vmem:[#allocation5 + $0x28] sm:$0xff]
    %v233 = vld [vmem:[#allocation5 + $0x30] sm:$0xff]
    %v234 = vld [vmem:[#allocation5 + $0x38] sm:$0xff]
    %v235 = vld [vmem:[#allocation5 + $0x40] sm:$0xff]
    %v236 = vld [vmem:[#allocation5 + $0x48] sm:$0xff]
    %v237 = vld [vmem:[#allocation5 + $0x50] sm:$0xff]
    %v238 = vld [vmem:[#allocation5 + $0x58] sm:$0xff]
    %v239 = vld [vmem:[#allocation5 + $0x60] sm:$0xff]
    %v240 = vld [vmem:[#allocation5 + $0x68] sm:$0xff]
    %v241 = vld [vmem:[#allocation5 + $0x70] sm:$0xff]
    %v242 = vld [vmem:[#allocation5 + $0x78] sm:$0xff]
    %v243 = vld [vmem:[#allocation5 + $0x80] sm:$0xff]
    %v244 = vld [vmem:[#allocation5 + $0x88] sm:$0xff]
    %v245 = vld [vmem:[#allocation5 + $0x90] sm:$0xff]
    %v246 = vld [vmem:[#allocation5 + $0x98] sm:$0xff]
    %v247 = vld [vmem:[#allocation5 + $0xa0] sm:$0xff]
    %v248 = vld [vmem:[#allocation5 + $0xa8] sm:$0xff]
    %v249 = vld [vmem:[#allocation5 + $0xb0] sm:$0xff]
    %v250 = vld [vmem:[#allocation5 + $0xb8] sm:$0xff]
    %v251 = vld [vmem:[#allocation5 + $0xc0] sm:$0xff]
    %v252 = vld [vmem:[#allocation5 + $0xc8] sm:$0xff]
    %v253 = vld [vmem:[#allocation5 + $0xd0] sm:$0xff]
    %v254 = vld [vmem:[#allocation5 + $0xd8] sm:$0xff]
    %v255 = vld [vmem:[#allocation5 + $0xe0] sm:$0xff]
    %v256 = vld [vmem:[#allocation5 + $0xe8] sm:$0xff]
    %v257 = vld [vmem:[#allocation5 + $0xf0] sm:$0xff]
    %v258 = vld [vmem:[#allocation5 + $0xf8] sm:$0xff]
    %v259 = vld [vmem:[#allocation5 + $0x100] sm:$0xff]
    %v260 = vld [vmem:[#allocation5 + $0x108] sm:$0xff]
    %v261 = vld [vmem:[#allocation5 + $0x110] sm:$0xff]
    %v262 = vld [vmem:[#allocation5 + $0x118] sm:$0xff]
    %v263 = vld [vmem:[#allocation5 + $0x120] sm:$0xff]
    %v264 = vld [vmem:[#allocation5 + $0x128] sm:$0xff]
    %v265 = vld [vmem:[#allocation5 + $0x130] sm:$0xff]
    %v266 = vld [vmem:[#allocation5 + $0x138] sm:$0xff]
    %v267 = vld [vmem:[#allocation5 + $0x140] sm:$0xff]
    %v268 = vld [vmem:[#allocation5 + $0x148] sm:$0xff]
    %v269 = vld [vmem:[#allocation5 + $0x150] sm:$0xff]
    %v270 = vld [vmem:[#allocation5 + $0x158] sm:$0xff]
    %v271 = vld [vmem:[#allocation5 + $0x160] sm:$0xff]
    %v272 = vld [vmem:[#allocation5 + $0x168] sm:$0xff]
    %v273 = vld [vmem:[#allocation5 + $0x170] sm:$0xff]
    %v274 = vld [vmem:[#allocation5 + $0x178] sm:$0xff]
    %v275 = vld [vmem:[#allocation5 + $0x180] sm:$0xff]
    %v276 = vld [vmem:[#allocation5 + $0x188] sm:$0xff]
    %v277 = vld [vmem:[#allocation5 + $0x190] sm:$0xff]
    %v278 = vld [vmem:[#allocation5 + $0x198] sm:$0xff]
    %v279 = vld [vmem:[#allocation5 + $0x1a0] sm:$0xff]
    %v280 = vld [vmem:[#allocation5 + $0x1a8] sm:$0xff]
    %v281 = vld [vmem:[#allocation5 + $0x1b0] sm:$0xff]
    %v282 = vld [vmem:[#allocation5 + $0x1b8] sm:$0xff]
    %v283 = vld [vmem:[#allocation5 + $0x1c0] sm:$0xff]
    %v284 = vld [vmem:[#allocation5 + $0x1c8] sm:$0xff]
    %v285 = vld [vmem:[#allocation5 + $0x1d0] sm:$0xff]
    %v286 = vld [vmem:[#allocation5 + $0x1d8] sm:$0xff]
    %v287 = vld [vmem:[#allocation5 + $0x1e0] sm:$0xff]
    %v288 = vld [vmem:[#allocation5 + $0x1e8] sm:$0xff]
    %v289 = vld [vmem:[#allocation5 + $0x1f0] sm:$0xff]
    %v290 = vld [vmem:[#allocation5 + $0x1f8] sm:$0xff]
    %v292 = vperm.slane %v226, 0
    %v293 = vperm.slane %v226, 1
    %v360 = vunpack.c.l.b16 %v227
    %v361 = vunpack.c.h.b16 %v227
    %v362 = vunpack.c.l.b16 %v228
    %v363 = vunpack.c.h.b16 %v228
    %v364 = vunpack.c.l.b16 %v229
    %v365 = vunpack.c.h.b16 %v229
    %v366 = vunpack.c.l.b16 %v230
    %v367 = vunpack.c.h.b16 %v230
    %v368 = vunpack.c.l.b16 %v231
    %v369 = vunpack.c.h.b16 %v231
    %v370 = vunpack.c.l.b16 %v232
    %v371 = vunpack.c.h.b16 %v232
    %v372 = vunpack.c.l.b16 %v233
    %v373 = vunpack.c.h.b16 %v233
    %v374 = vunpack.c.l.b16 %v234
    %v375 = vunpack.c.h.b16 %v234
    %v376 = vunpack.c.l.b16 %v235
    %v377 = vunpack.c.h.b16 %v235
    %v378 = vunpack.c.l.b16 %v236
    %v379 = vunpack.c.h.b16 %v236
    %v380 = vunpack.c.l.b16 %v237
    %v381 = vunpack.c.h.b16 %v237
    %v382 = vunpack.c.l.b16 %v238
    %v383 = vunpack.c.h.b16 %v238
    %v384 = vunpack.c.l.b16 %v239
    %v385 = vunpack.c.h.b16 %v239
    %v386 = vunpack.c.l.b16 %v240
    %v387 = vunpack.c.h.b16 %v240
    %v388 = vunpack.c.l.b16 %v241
    %v389 = vunpack.c.h.b16 %v241
    %v390 = vunpack.c.l.b16 %v242
    %v391 = vunpack.c.h.b16 %v242
    %v392 = vunpack.c.l.b16 %v243
    %v393 = vunpack.c.h.b16 %v243
    %v394 = vunpack.c.l.b16 %v244
    %v395 = vunpack.c.h.b16 %v244
    %v396 = vunpack.c.l.b16 %v245
    %v397 = vunpack.c.h.b16 %v245
    %v398 = vunpack.c.l.b16 %v246
    %v399 = vunpack.c.h.b16 %v246
    %v400 = vunpack.c.l.b16 %v247
    %v401 = vunpack.c.h.b16 %v247
    %v402 = vunpack.c.l.b16 %v248
    %v403 = vunpack.c.h.b16 %v248
    %v404 = vunpack.c.l.b16 %v249
    %v405 = vunpack.c.h.b16 %v249
    %v406 = vunpack.c.l.b16 %v250
    %v407 = vunpack.c.h.b16 %v250
    %v408 = vunpack.c.l.b16 %v251
    %v409 = vunpack.c.h.b16 %v251
    %v410 = vunpack.c.l.b16 %v252
    %v411 = vunpack.c.h.b16 %v252
    %v412 = vunpack.c.l.b16 %v253
    %v413 = vunpack.c.h.b16 %v253
    %v414 = vunpack.c.l.b16 %v254
    %v415 = vunpack.c.h.b16 %v254
    %v416 = vunpack.c.l.b16 %v255
    %v417 = vunpack.c.h.b16 %v255
    %v418 = vunpack.c.l.b16 %v256
    %v419 = vunpack.c.h.b16 %v256
    %v420 = vunpack.c.l.b16 %v257
    %v421 = vunpack.c.h.b16 %v257
    %v422 = vunpack.c.l.b16 %v258
    %v423 = vunpack.c.h.b16 %v258
    %v424 = vunpack.c.l.b16 %v259
    %v425 = vunpack.c.h.b16 %v259
    %v426 = vunpack.c.l.b16 %v260
    %v427 = vunpack.c.h.b16 %v260
    %v428 = vunpack.c.l.b16 %v261
    %v429 = vunpack.c.h.b16 %v261
    %v430 = vunpack.c.l.b16 %v262
    %v431 = vunpack.c.h.b16 %v262
    %v432 = vunpack.c.l.b16 %v263
    %v433 = vunpack.c.h.b16 %v263
    %v434 = vunpack.c.l.b16 %v264
    %v435 = vunpack.c.h.b16 %v264
    %v436 = vunpack.c.l.b16 %v265
    %v437 = vunpack.c.h.b16 %v265
    %v438 = vunpack.c.l.b16 %v266
    %v439 = vunpack.c.h.b16 %v266
    %v440 = vunpack.c.l.b16 %v267
    %v441 = vunpack.c.h.b16 %v267
    %v442 = vunpack.c.l.b16 %v268
    %v443 = vunpack.c.h.b16 %v268
    %v444 = vunpack.c.l.b16 %v269
    %v445 = vunpack.c.h.b16 %v269
    %v446 = vunpack.c.l.b16 %v270
    %v447 = vunpack.c.h.b16 %v270
    %v448 = vunpack.c.l.b16 %v271
    %v449 = vunpack.c.h.b16 %v271
    %v450 = vunpack.c.l.b16 %v272
    %v451 = vunpack.c.h.b16 %v272
    %v452 = vunpack.c.l.b16 %v273
    %v453 = vunpack.c.h.b16 %v273
    %v454 = vunpack.c.l.b16 %v274
    %v455 = vunpack.c.h.b16 %v274
    %v456 = vunpack.c.l.b16 %v275
    %v457 = vunpack.c.h.b16 %v275
    %v458 = vunpack.c.l.b16 %v276
    %v459 = vunpack.c.h.b16 %v276
    %v460 = vunpack.c.l.b16 %v277
    %v461 = vunpack.c.h.b16 %v277
    %v462 = vunpack.c.l.b16 %v278
    %v463 = vunpack.c.h.b16 %v278
    %v464 = vunpack.c.l.b16 %v279
    %v465 = vunpack.c.h.b16 %v279
    %v466 = vunpack.c.l.b16 %v280
    %v467 = vunpack.c.h.b16 %v280
    %v468 = vunpack.c.l.b16 %v281
    %v469 = vunpack.c.h.b16 %v281
    %v470 = vunpack.c.l.b16 %v282
    %v471 = vunpack.c.h.b16 %v282
    %v472 = vunpack.c.l.b16 %v283
    %v473 = vunpack.c.h.b16 %v283
    %v474 = vunpack.c.l.b16 %v284
    %v475 = vunpack.c.h.b16 %v284
    %v476 = vunpack.c.l.b16 %v285
    %v477 = vunpack.c.h.b16 %v285
    %v478 = vunpack.c.l.b16 %v286
    %v479 = vunpack.c.h.b16 %v286
    %v480 = vunpack.c.l.b16 %v287
    %v481 = vunpack.c.h.b16 %v287
    %v482 = vunpack.c.l.b16 %v288
    %v483 = vunpack.c.h.b16 %v288
    %v484 = vunpack.c.l.b16 %v289
    %v485 = vunpack.c.h.b16 %v289
    %v486 = vunpack.c.l.b16 %v290
    %v487 = vunpack.c.h.b16 %v290
    %v488 = vpack.c.b16 %v362, %v360
    %v489 = vpack.c.b16 %v363, %v361
    %v490 = vpack.c.b16 %v366, %v364
    %v491 = vpack.c.b16 %v367, %v365
    %v492 = vpack.c.b16 %v370, %v368
    %v493 = vpack.c.b16 %v371, %v369
    %v494 = vpack.c.b16 %v374, %v372
    %v495 = vpack.c.b16 %v375, %v373
    %v496 = vpack.c.b16 %v378, %v376
    %v497 = vpack.c.b16 %v379, %v377
    %v498 = vpack.c.b16 %v382, %v380
    %v499 = vpack.c.b16 %v383, %v381
    %v500 = vpack.c.b16 %v386, %v384
    %v501 = vpack.c.b16 %v387, %v385
    %v502 = vpack.c.b16 %v390, %v388
    %v503 = vpack.c.b16 %v391, %v389
    %v504 = vpack.c.b16 %v394, %v392
    %v505 = vpack.c.b16 %v395, %v393
    %v506 = vpack.c.b16 %v398, %v396
    %v507 = vpack.c.b16 %v399, %v397
    %v508 = vpack.c.b16 %v402, %v400
    %v509 = vpack.c.b16 %v403, %v401
    %v510 = vpack.c.b16 %v406, %v404
    %v511 = vpack.c.b16 %v407, %v405
    %v512 = vpack.c.b16 %v410, %v408
    %v513 = vpack.c.b16 %v411, %v409
    %v514 = vpack.c.b16 %v414, %v412
    %v515 = vpack.c.b16 %v415, %v413
    %v516 = vpack.c.b16 %v418, %v416
    %v517 = vpack.c.b16 %v419, %v417
    %v518 = vpack.c.b16 %v422, %v420
    %v519 = vpack.c.b16 %v423, %v421
    %v520 = vpack.c.b16 %v426, %v424
    %v521 = vpack.c.b16 %v427, %v425
    %v522 = vpack.c.b16 %v430, %v428
    %v523 = vpack.c.b16 %v431, %v429
    %v524 = vpack.c.b16 %v434, %v432
    %v525 = vpack.c.b16 %v435, %v433
    %v526 = vpack.c.b16 %v438, %v436
    %v527 = vpack.c.b16 %v439, %v437
    %v528 = vpack.c.b16 %v442, %v440
    %v529 = vpack.c.b16 %v443, %v441
    %v530 = vpack.c.b16 %v446, %v444
    %v531 = vpack.c.b16 %v447, %v445
    %v532 = vpack.c.b16 %v450, %v448
    %v533 = vpack.c.b16 %v451, %v449
    %v534 = vpack.c.b16 %v454, %v452
    %v535 = vpack.c.b16 %v455, %v453
    %v536 = vpack.c.b16 %v458, %v456
    %v537 = vpack.c.b16 %v459, %v457
    %v538 = vpack.c.b16 %v462, %v460
    %v539 = vpack.c.b16 %v463, %v461
    %v540 = vpack.c.b16 %v466, %v464
    %v541 = vpack.c.b16 %v467, %v465
    %v542 = vpack.c.b16 %v470, %v468
    %v543 = vpack.c.b16 %v471, %v469
    %v544 = vpack.c.b16 %v474, %v472
    %v545 = vpack.c.b16 %v475, %v473
    %v546 = vpack.c.b16 %v478, %v476
    %v547 = vpack.c.b16 %v479, %v477
    %v548 = vpack.c.b16 %v482, %v480
    %v549 = vpack.c.b16 %v483, %v481
    %v550 = vpack.c.b16 %v486, %v484
    %v551 = vpack.c.b16 %v487, %v485
    %616 = vmatpush.bf16.msra.mxu0 %v502
    %617 = vmatpush.bf16.msra.mxu0 %v500
    %618 = vmatpush.bf16.msra.mxu0 %v498
    %619 = vmatpush.bf16.msra.mxu0 %v496
    %620 = vmatpush.bf16.msra.mxu0 %v494
    %621 = vmatpush.bf16.msra.mxu0 %v492
    %622 = vmatpush.bf16.msra.mxu0 %v490
    %623 = vmatpush.bf16.msra.mxu0 %v488
    %624 = vmatmul.bf16.gmra.mxu0 %v221
    %v625 = vpop.f32.mrf.mxu0
    %v626 = vadd.f32 %v292, %v625
    %v627 = vpop.f32.mrf.mxu0
    %v628 = vadd.f32 %v292, %v627
    %629 = vdwg.mxu0
    %630 = vmatpush.bf16.msra.mxu0 %v518
    %631 = vmatpush.bf16.msra.mxu0 %v516
    %632 = vmatpush.bf16.msra.mxu0 %v514
    %633 = vmatpush.bf16.msra.mxu0 %v512
    %634 = vmatpush.bf16.msra.mxu0 %v510
    %635 = vmatpush.bf16.msra.mxu0 %v508
    %636 = vmatpush.bf16.msra.mxu0 %v506
    %637 = vmatpush.bf16.msra.mxu0 %v504
    %638 = vmatmul.bf16.gmra.mxu0 %v222
    %v639 = vpop.f32.mrf.mxu0
    %v640 = vadd.f32 %v626, %v639
    %v641 = vpop.f32.mrf.mxu0
    %v642 = vadd.f32 %v628, %v641
    %643 = vdwg.mxu0
    %644 = vmatpush.bf16.msra.mxu0 %v534
    %645 = vmatpush.bf16.msra.mxu0 %v532
    %646 = vmatpush.bf16.msra.mxu0 %v530
    %647 = vmatpush.bf16.msra.mxu0 %v528
    %648 = vmatpush.bf16.msra.mxu0 %v526
    %649 = vmatpush.bf16.msra.mxu0 %v524
    %650 = vmatpush.bf16.msra.mxu0 %v522
    %651 = vmatpush.bf16.msra.mxu0 %v520
    %652 = vmatmul.bf16.gmra.mxu0 %v223
    %v653 = vpop.f32.mrf.mxu0
    %v654 = vadd.f32 %v640, %v653
    %v655 = vpop.f32.mrf.mxu0
    %v656 = vadd.f32 %v642, %v655
    %657 = vdwg.mxu0
    %658 = vmatpush.bf16.msra.mxu0 %v550
    %659 = vmatpush.bf16.msra.mxu0 %v548
    %660 = vmatpush.bf16.msra.mxu0 %v546
    %661 = vmatpush.bf16.msra.mxu0 %v544
    %662 = vmatpush.bf16.msra.mxu0 %v542
    %663 = vmatpush.bf16.msra.mxu0 %v540
    %664 = vmatpush.bf16.msra.mxu0 %v538
    %665 = vmatpush.bf16.msra.mxu0 %v536
    %666 = vmatmul.bf16.gmra.mxu0 %v224
    %v667 = vpop.f32.mrf.mxu0
    %v668 = vadd.f32 %v654, %v667
    %v669 = vpop.f32.mrf.mxu0
    %v670 = vadd.f32 %v656, %v669
    %671 = vdwg.mxu0
    %672 = vmatpush.bf16.msra.mxu0 %v503
    %673 = vmatpush.bf16.msra.mxu0 %v501
    %674 = vmatpush.bf16.msra.mxu0 %v499
    %675 = vmatpush.bf16.msra.mxu0 %v497
    %676 = vmatpush.bf16.msra.mxu0 %v495
    %677 = vmatpush.bf16.msra.mxu0 %v493
    %678 = vmatpush.bf16.msra.mxu0 %v491
    %679 = vmatpush.bf16.msra.mxu0 %v489
    %680 = vmatmul.bf16.gmra.mxu0 %v221
    %v681 = vpop.f32.mrf.mxu0
    %v682 = vadd.f32 %v293, %v681
    %v683 = vpop.f32.mrf.mxu0
    %v684 = vadd.f32 %v293, %v683
    %685 = vdwg.mxu0
    %686 = vmatpush.bf16.msra.mxu0 %v519
    %687 = vmatpush.bf16.msra.mxu0 %v517
    %688 = vmatpush.bf16.msra.mxu0 %v515
    %689 = vmatpush.bf16.msra.mxu0 %v513
    %690 = vmatpush.bf16.msra.mxu0 %v511
    %691 = vmatpush.bf16.msra.mxu0 %v509
    %692 = vmatpush.bf16.msra.mxu0 %v507
    %693 = vmatpush.bf16.msra.mxu0 %v505
    %694 = vmatmul.bf16.gmra.mxu0 %v222
    %v695 = vpop.f32.mrf.mxu0
    %v696 = vadd.f32 %v682, %v695
    %v697 = vpop.f32.mrf.mxu0
    %v698 = vadd.f32 %v684, %v697
    %699 = vdwg.mxu0
    %700 = vmatpush.bf16.msra.mxu0 %v535
    %701 = vmatpush.bf16.msra.mxu0 %v533
    %702 = vmatpush.bf16.msra.mxu0 %v531
    %703 = vmatpush.bf16.msra.mxu0 %v529
    %704 = vmatpush.bf16.msra.mxu0 %v527
    %705 = vmatpush.bf16.msra.mxu0 %v525
    %706 = vmatpush.bf16.msra.mxu0 %v523
    %707 = vmatpush.bf16.msra.mxu0 %v521
    %708 = vmatmul.bf16.gmra.mxu0 %v223
    %v709 = vpop.f32.mrf.mxu0
    %v710 = vadd.f32 %v696, %v709
    %v711 = vpop.f32.mrf.mxu0
    %v712 = vadd.f32 %v698, %v711
    %713 = vdwg.mxu0
    %714 = vmatpush.bf16.msra.mxu0 %v551
    %715 = vmatpush.bf16.msra.mxu0 %v549
    %716 = vmatpush.bf16.msra.mxu0 %v547
    %717 = vmatpush.bf16.msra.mxu0 %v545
    %718 = vmatpush.bf16.msra.mxu0 %v543
    %719 = vmatpush.bf16.msra.mxu0 %v541
    %720 = vmatpush.bf16.msra.mxu0 %v539
    %721 = vmatpush.bf16.msra.mxu0 %v537
    %722 = vmatmul.bf16.gmra.mxu0 %v224
    %v723 = vpop.f32.mrf.mxu0
    %v724 = vadd.f32 %v710, %v723
    %v725 = vpop.f32.mrf.mxu0
    %v726 = vadd.f32 %v712, %v725
    %727 = vdwg.mxu0
    %v728 = vmax.f32 %v668, 0.0
    %v729 = vmax.f32 %v724, 0.0
    %v730 = vmax.f32 %v670, 0.0
    %v731 = vmax.f32 %v726, 0.0
    %v732 = vpack.c.bf16 %v730, %v728
    %v733 = vpack.c.bf16 %v731, %v729
    %v734 = vld [vmem:[%s8 + $0x2] ss:$0 sm:$0xff]
    %v735 = vld [vmem:[#allocation7] sm:$0xf]
    %v736 = vld [vmem:[#allocation7 + $0x4] sm:$0xf]
    %v737 = vld [vmem:[#allocation7 + $0x8] sm:$0xf]
    %v738 = vld [vmem:[#allocation7 + $0xc] sm:$0xf]
    %v739 = vld [vmem:[#allocation7 + $0x10] sm:$0xf]
    %v740 = vld [vmem:[#allocation7 + $0x14] sm:$0xf]
    %v741 = vld [vmem:[#allocation7 + $0x18] sm:$0xf]
    %v742 = vld [vmem:[#allocation7 + $0x1c] sm:$0xf]
    %v743 = vld [vmem:[#allocation7 + $0x20] sm:$0xf]
    %v744 = vld [vmem:[#allocation7 + $0x24] sm:$0xf]
    %v745 = vld [vmem:[#allocation7 + $0x28] sm:$0xf]
    %v746 = vld [vmem:[#allocation7 + $0x2c] sm:$0xf]
    %v747 = vld [vmem:[#allocation7 + $0x30] sm:$0xf]
    %v748 = vld [vmem:[#allocation7 + $0x34] sm:$0xf]
    %v749 = vld [vmem:[#allocation7 + $0x38] sm:$0xf]
    %v750 = vld [vmem:[#allocation7 + $0x3c] sm:$0xf]
    %v751 = vld [vmem:[#allocation7 + $0x40] sm:$0xf]
    %v752 = vld [vmem:[#allocation7 + $0x44] sm:$0xf]
    %v753 = vld [vmem:[#allocation7 + $0x48] sm:$0xf]
    %v754 = vld [vmem:[#allocation7 + $0x4c] sm:$0xf]
    %v755 = vld [vmem:[#allocation7 + $0x50] sm:$0xf]
    %v756 = vld [vmem:[#allocation7 + $0x54] sm:$0xf]
    %v757 = vld [vmem:[#allocation7 + $0x58] sm:$0xf]
    %v758 = vld [vmem:[#allocation7 + $0x5c] sm:$0xf]
    %v759 = vld [vmem:[#allocation7 + $0x60] sm:$0xf]
    %v760 = vld [vmem:[#allocation7 + $0x64] sm:$0xf]
    %v761 = vld [vmem:[#allocation7 + $0x68] sm:$0xf]
    %v762 = vld [vmem:[#allocation7 + $0x6c] sm:$0xf]
    %v763 = vld [vmem:[#allocation7 + $0x70] sm:$0xf]
    %v764 = vld [vmem:[#allocation7 + $0x74] sm:$0xf]
    %v765 = vld [vmem:[#allocation7 + $0x78] sm:$0xf]
    %v766 = vld [vmem:[#allocation7 + $0x7c] sm:$0xf]
    %v799 = vunpack.c.l.b16 %v735
    %v800 = vunpack.c.l.b16 %v736
    %v801 = vunpack.c.l.b16 %v737
    %v802 = vunpack.c.l.b16 %v738
    %v803 = vunpack.c.l.b16 %v739
    %v804 = vunpack.c.l.b16 %v740
    %v805 = vunpack.c.l.b16 %v741
    %v806 = vunpack.c.l.b16 %v742
    %v807 = vunpack.c.l.b16 %v743
    %v808 = vunpack.c.l.b16 %v744
    %v809 = vunpack.c.l.b16 %v745
    %v810 = vunpack.c.l.b16 %v746
    %v811 = vunpack.c.l.b16 %v747
    %v812 = vunpack.c.l.b16 %v748
    %v813 = vunpack.c.l.b16 %v749
    %v814 = vunpack.c.l.b16 %v750
    %v815 = vunpack.c.l.b16 %v751
    %v816 = vunpack.c.l.b16 %v752
    %v817 = vunpack.c.l.b16 %v753
    %v818 = vunpack.c.l.b16 %v754
    %v819 = vunpack.c.l.b16 %v755
    %v820 = vunpack.c.l.b16 %v756
    %v821 = vunpack.c.l.b16 %v757
    %v822 = vunpack.c.l.b16 %v758
    %v823 = vunpack.c.l.b16 %v759
    %v824 = vunpack.c.l.b16 %v760
    %v825 = vunpack.c.l.b16 %v761
    %v826 = vunpack.c.l.b16 %v762
    %v827 = vunpack.c.l.b16 %v763
    %v828 = vunpack.c.l.b16 %v764
    %v829 = vunpack.c.l.b16 %v765
    %v830 = vunpack.c.l.b16 %v766
    %v831 = vpack.c.b16 %v800, %v799
    %v832 = vpack.c.b16 %v802, %v801
    %v833 = vpack.c.b16 %v804, %v803
    %v834 = vpack.c.b16 %v806, %v805
    %v835 = vpack.c.b16 %v808, %v807
    %v836 = vpack.c.b16 %v810, %v809
    %v837 = vpack.c.b16 %v812, %v811
    %v838 = vpack.c.b16 %v814, %v813
    %v839 = vpack.c.b16 %v816, %v815
    %v840 = vpack.c.b16 %v818, %v817
    %v841 = vpack.c.b16 %v820, %v819
    %v842 = vpack.c.b16 %v822, %v821
    %v843 = vpack.c.b16 %v824, %v823
    %v844 = vpack.c.b16 %v826, %v825
    %v845 = vpack.c.b16 %v828, %v827
    %v846 = vpack.c.b16 %v830, %v829
    %863 = vmatpush.bf16.msra.mxu0 %v838
    %864 = vmatpush.bf16.msra.mxu0 %v837
    %865 = vmatpush.bf16.msra.mxu0 %v836
    %866 = vmatpush.bf16.msra.mxu0 %v835
    %867 = vmatpush.bf16.msra.mxu0 %v834
    %868 = vmatpush.bf16.msra.mxu0 %v833
    %869 = vmatpush.bf16.msra.mxu0 %v832
    %870 = vmatpush.bf16.msra.mxu0 %v831
    %871 = vmatmul.bf16.gmra.mxu0 %v732
    %v872 = vpop.f32.mrf.mxu0
    %v873 = vadd.f32 %v734, %v872
    %v874 = vpop.f32.mrf.mxu0
    %v875 = vadd.f32 %v734, %v874
    %876 = vdwg.mxu0
    %877 = vmatpush.bf16.msra.mxu0 %v846
    %878 = vmatpush.bf16.msra.mxu0 %v845
    %879 = vmatpush.bf16.msra.mxu0 %v844
    %880 = vmatpush.bf16.msra.mxu0 %v843
    %881 = vmatpush.bf16.msra.mxu0 %v842
    %882 = vmatpush.bf16.msra.mxu0 %v841
    %883 = vmatpush.bf16.msra.mxu0 %v840
    %884 = vmatpush.bf16.msra.mxu0 %v839
    %885 = vmatmul.bf16.gmra.mxu0 %v733
    %v886 = vpop.f32.mrf.mxu0
    %v887 = vadd.f32 %v873, %v886
    %v888 = vpop.f32.mrf.mxu0
    %v889 = vadd.f32 %v875, %v888
    %890 = vdwg.mxu0
    %v891 = vmax.f32 %v887, 0.0
    %v892 = vmax.f32 %v889, 0.0
    %v893 = vpack.c.bf16 %v892, %v891
    %s894 = scalar_lea.vmem %s8, 3
    %v895 = vld [vmem:[%s894] ss:$8 sm:$0x3]
    %v896 = vld [vmem:[#allocation8] sm:$0xff]
    %v897 = vld [vmem:[#allocation8 + $0x8] sm:$0xff]
    %v898 = vld [vmem:[#allocation8 + $0x10] sm:$0xff]
    %v899 = vld [vmem:[#allocation8 + $0x18] sm:$0xff]
    %v900 = vld [vmem:[#allocation8 + $0x20] sm:$0xff]
    %v901 = vld [vmem:[#allocation8 + $0x28] sm:$0xff]
    %v902 = vld [vmem:[#allocation8 + $0x30] sm:$0xff]
    %v903 = vld [vmem:[#allocation8 + $0x38] sm:$0xff]
    %v904 = vld [vmem:[#allocation8 + $0x40] sm:$0xff]
    %v905 = vld [vmem:[#allocation8 + $0x48] sm:$0xff]
    %v906 = vld [vmem:[#allocation8 + $0x50] sm:$0xff]
    %v907 = vld [vmem:[#allocation8 + $0x58] sm:$0xff]
    %v908 = vld [vmem:[#allocation8 + $0x60] sm:$0xff]
    %v909 = vld [vmem:[#allocation8 + $0x68] sm:$0xff]
    %v910 = vld [vmem:[#allocation8 + $0x70] sm:$0xff]
    %v911 = vld [vmem:[#allocation8 + $0x78] sm:$0xff]
    %v913 = vperm.slane %v895, 0
    %v914 = vperm.slane %v895, 1
    %v933 = vunpack.c.l.b16 %v896
    %v934 = vunpack.c.h.b16 %v896
    %v935 = vunpack.c.l.b16 %v897
    %v936 = vunpack.c.h.b16 %v897
    %v937 = vunpack.c.l.b16 %v898
    %v938 = vunpack.c.h.b16 %v898
    %v939 = vunpack.c.l.b16 %v899
    %v940 = vunpack.c.h.b16 %v899
    %v941 = vunpack.c.l.b16 %v900
    %v942 = vunpack.c.h.b16 %v900
    %v943 = vunpack.c.l.b16 %v901
    %v944 = vunpack.c.h.b16 %v901
    %v945 = vunpack.c.l.b16 %v902
    %v946 = vunpack.c.h.b16 %v902
    %v947 = vunpack.c.l.b16 %v903
    %v948 = vunpack.c.h.b16 %v903
    %v949 = vunpack.c.l.b16 %v904
    %v950 = vunpack.c.h.b16 %v904
    %v951 = vunpack.c.l.b16 %v905
    %v952 = vunpack.c.h.b16 %v905
    %v953 = vunpack.c.l.b16 %v906
    %v954 = vunpack.c.h.b16 %v906
    %v955 = vunpack.c.l.b16 %v907
    %v956 = vunpack.c.h.b16 %v907
    %v957 = vunpack.c.l.b16 %v908
    %v958 = vunpack.c.h.b16 %v908
    %v959 = vunpack.c.l.b16 %v909
    %v960 = vunpack.c.h.b16 %v909
    %v961 = vunpack.c.l.b16 %v910
    %v962 = vunpack.c.h.b16 %v910
    %v963 = vunpack.c.l.b16 %v911
    %v964 = vunpack.c.h.b16 %v911
    %v965 = vpack.c.b16 %v935, %v933
    %v966 = vpack.c.b16 %v936, %v934
    %v967 = vpack.c.b16 %v939, %v937
    %v968 = vpack.c.b16 %v940, %v938
    %v969 = vpack.c.b16 %v943, %v941
    %v970 = vpack.c.b16 %v944, %v942
    %v971 = vpack.c.b16 %v947, %v945
    %v972 = vpack.c.b16 %v948, %v946
    %v973 = vpack.c.b16 %v951, %v949
    %v974 = vpack.c.b16 %v952, %v950
    %v975 = vpack.c.b16 %v955, %v953
    %v976 = vpack.c.b16 %v956, %v954
    %v977 = vpack.c.b16 %v959, %v957
    %v978 = vpack.c.b16 %v960, %v958
    %v979 = vpack.c.b16 %v963, %v961
    %v980 = vpack.c.b16 %v964, %v962
    %997 = vmatpush.bf16.msra.mxu0 %v979
    %998 = vmatpush.bf16.msra.mxu0 %v977
    %999 = vmatpush.bf16.msra.mxu0 %v975
    %1000 = vmatpush.bf16.msra.mxu0 %v973
    %1001 = vmatpush.bf16.msra.mxu0 %v971
    %1002 = vmatpush.bf16.msra.mxu0 %v969
    %1003 = vmatpush.bf16.msra.mxu0 %v967
    %1004 = vmatpush.bf16.msra.mxu0 %v965
    %1005 = vmatmul.bf16.gmra.mxu0 %v893
    %v1006 = vpop.f32.mrf.mxu0
    %v1007 = vadd.f32 %v913, %v1006
    %v1008 = vpop.f32.mrf.mxu0
    %v1009 = vadd.f32 %v913, %v1008
    %1010 = vdwg.mxu0
    %1011 = vmatpush.bf16.msra.mxu0 %v980
    %1012 = vmatpush.bf16.msra.mxu0 %v978
    %1013 = vmatpush.bf16.msra.mxu0 %v976
    %1014 = vmatpush.bf16.msra.mxu0 %v974
    %1015 = vmatpush.bf16.msra.mxu0 %v972
    %1016 = vmatpush.bf16.msra.mxu0 %v970
    %1017 = vmatpush.bf16.msra.mxu0 %v968
    %1018 = vmatpush.bf16.msra.mxu0 %v966
    %1019 = vmatmul.bf16.gmra.mxu0 %v893
    %v1020 = vpop.f32.mrf.mxu0
    %v1021 = vadd.f32 %v914, %v1020
    %v1022 = vpop.f32.mrf.mxu0
    %v1023 = vadd.f32 %v914, %v1022
    %1024 = vdwg.mxu0
    %v1025 = vmax.f32 %v1007, 0.0
    %v1026 = vmax.f32 %v1021, 0.0
    %v1027 = vmax.f32 %v1009, 0.0
    %v1028 = vmax.f32 %v1023, 0.0
    %v1029 = vpack.c.bf16 %v1027, %v1025
    %v1030 = vpack.c.bf16 %v1028, %v1026
    %v1031 = vld [vmem:[%s8 + $0x4] ss:$0 sm:$0xff]
    %v1032 = vld [vmem:[#allocation10] sm:$0xf]
    %v1033 = vld [vmem:[#allocation10 + $0x4] sm:$0xf]
    %v1034 = vld [vmem:[#allocation10 + $0x8] sm:$0xf]
    %v1035 = vld [vmem:[#allocation10 + $0xc] sm:$0xf]
    %v1036 = vld [vmem:[#allocation10 + $0x10] sm:$0xf]
    %v1037 = vld [vmem:[#allocation10 + $0x14] sm:$0xf]
    %v1038 = vld [vmem:[#allocation10 + $0x18] sm:$0xf]
    %v1039 = vld [vmem:[#allocation10 + $0x1c] sm:$0xf]
    %v1040 = vld [vmem:[#allocation10 + $0x20] sm:$0xf]
    %v1041 = vld [vmem:[#allocation10 + $0x24] sm:$0xf]
    %v1042 = vld [vmem:[#allocation10 + $0x28] sm:$0xf]
    %v1043 = vld [vmem:[#allocation10 + $0x2c] sm:$0xf]
    %v1044 = vld [vmem:[#allocation10 + $0x30] sm:$0xf]
    %v1045 = vld [vmem:[#allocation10 + $0x34] sm:$0xf]
    %v1046 = vld [vmem:[#allocation10 + $0x38] sm:$0xf]
    %v1047 = vld [vmem:[#allocation10 + $0x3c] sm:$0xf]
    %v1048 = vld [vmem:[#allocation10 + $0x40] sm:$0xf]
    %v1049 = vld [vmem:[#allocation10 + $0x44] sm:$0xf]
    %v1050 = vld [vmem:[#allocation10 + $0x48] sm:$0xf]
    %v1051 = vld [vmem:[#allocation10 + $0x4c] sm:$0xf]
    %v1052 = vld [vmem:[#allocation10 + $0x50] sm:$0xf]
    %v1053 = vld [vmem:[#allocation10 + $0x54] sm:$0xf]
    %v1054 = vld [vmem:[#allocation10 + $0x58] sm:$0xf]
    %v1055 = vld [vmem:[#allocation10 + $0x5c] sm:$0xf]
    %v1056 = vld [vmem:[#allocation10 + $0x60] sm:$0xf]
    %v1057 = vld [vmem:[#allocation10 + $0x64] sm:$0xf]
    %v1058 = vld [vmem:[#allocation10 + $0x68] sm:$0xf]
    %v1059 = vld [vmem:[#allocation10 + $0x6c] sm:$0xf]
    %v1060 = vld [vmem:[#allocation10 + $0x70] sm:$0xf]
    %v1061 = vld [vmem:[#allocation10 + $0x74] sm:$0xf]
    %v1062 = vld [vmem:[#allocation10 + $0x78] sm:$0xf]
    %v1063 = vld [vmem:[#allocation10 + $0x7c] sm:$0xf]
    %v1096 = vunpack.c.l.b16 %v1032
    %v1097 = vunpack.c.l.b16 %v1033
    %v1098 = vunpack.c.l.b16 %v1034
    %v1099 = vunpack.c.l.b16 %v1035
    %v1100 = vunpack.c.l.b16 %v1036
    %v1101 = vunpack.c.l.b16 %v1037
    %v1102 = vunpack.c.l.b16 %v1038
    %v1103 = vunpack.c.l.b16 %v1039
    %v1104 = vunpack.c.l.b16 %v1040
    %v1105 = vunpack.c.l.b16 %v1041
    %v1106 = vunpack.c.l.b16 %v1042
    %v1107 = vunpack.c.l.b16 %v1043
    %v1108 = vunpack.c.l.b16 %v1044
    %v1109 = vunpack.c.l.b16 %v1045
    %v1110 = vunpack.c.l.b16 %v1046
    %v1111 = vunpack.c.l.b16 %v1047
    %v1112 = vunpack.c.l.b16 %v1048
    %v1113 = vunpack.c.l.b16 %v1049
    %v1114 = vunpack.c.l.b16 %v1050
    %v1115 = vunpack.c.l.b16 %v1051
    %v1116 = vunpack.c.l.b16 %v1052
    %v1117 = vunpack.c.l.b16 %v1053
    %v1118 = vunpack.c.l.b16 %v1054
    %v1119 = vunpack.c.l.b16 %v1055
    %v1120 = vunpack.c.l.b16 %v1056
    %v1121 = vunpack.c.l.b16 %v1057
    %v1122 = vunpack.c.l.b16 %v1058
    %v1123 = vunpack.c.l.b16 %v1059
    %v1124 = vunpack.c.l.b16 %v1060
    %v1125 = vunpack.c.l.b16 %v1061
    %v1126 = vunpack.c.l.b16 %v1062
    %v1127 = vunpack.c.l.b16 %v1063
    %v1128 = vpack.c.b16 %v1097, %v1096
    %v1129 = vpack.c.b16 %v1099, %v1098
    %v1130 = vpack.c.b16 %v1101, %v1100
    %v1131 = vpack.c.b16 %v1103, %v1102
    %v1132 = vpack.c.b16 %v1105, %v1104
    %v1133 = vpack.c.b16 %v1107, %v1106
    %v1134 = vpack.c.b16 %v1109, %v1108
    %v1135 = vpack.c.b16 %v1111, %v1110
    %v1136 = vpack.c.b16 %v1113, %v1112
    %v1137 = vpack.c.b16 %v1115, %v1114
    %v1138 = vpack.c.b16 %v1117, %v1116
    %v1139 = vpack.c.b16 %v1119, %v1118
    %v1140 = vpack.c.b16 %v1121, %v1120
    %v1141 = vpack.c.b16 %v1123, %v1122
    %v1142 = vpack.c.b16 %v1125, %v1124
    %v1143 = vpack.c.b16 %v1127, %v1126
    %1160 = vmatpush.bf16.msra.mxu0 %v1135
    %1161 = vmatpush.bf16.msra.mxu0 %v1134
    %1162 = vmatpush.bf16.msra.mxu0 %v1133
    %1163 = vmatpush.bf16.msra.mxu0 %v1132
    %1164 = vmatpush.bf16.msra.mxu0 %v1131
    %1165 = vmatpush.bf16.msra.mxu0 %v1130
    %1166 = vmatpush.bf16.msra.mxu0 %v1129
    %1167 = vmatpush.bf16.msra.mxu0 %v1128
    %1168 = vmatmul.bf16.gmra.mxu0 %v1029
    %v1169 = vpop.f32.mrf.mxu0
    %v1170 = vadd.f32 %v1031, %v1169
    %v1171 = vpop.f32.mrf.mxu0
    %v1172 = vadd.f32 %v1031, %v1171
    %1173 = vdwg.mxu0
    %1174 = vmatpush.bf16.msra.mxu0 %v1143
    %1175 = vmatpush.bf16.msra.mxu0 %v1142
    %1176 = vmatpush.bf16.msra.mxu0 %v1141
    %1177 = vmatpush.bf16.msra.mxu0 %v1140
    %1178 = vmatpush.bf16.msra.mxu0 %v1139
    %1179 = vmatpush.bf16.msra.mxu0 %v1138
    %1180 = vmatpush.bf16.msra.mxu0 %v1137
    %1181 = vmatpush.bf16.msra.mxu0 %v1136
    %1182 = vmatmul.bf16.gmra.mxu0 %v1030
    %v1183 = vpop.f32.mrf.mxu0
    %v1184 = vadd.f32 %v1170, %v1183
    %v1185 = vpop.f32.mrf.mxu0
    %v1186 = vadd.f32 %v1172, %v1185
    %1187 = vdwg.mxu0
    %v1188 = vmax.f32 %v1184, 0.0
    %v1189 = vmax.f32 %v1186, 0.0
    %v1190 = vpack.c.bf16 %v1189, %v1188
    %v1191 = vld [vmem:[%s8 + $0x5] ss:$0 sm:$0xff]
    %v1192 = vld [vmem:[%s6] sm:$0xf]
    %v1193 = vld [vmem:[%s6 + $0x4] sm:$0xf]
    %v1194 = vld [vmem:[%s6 + $0x8] sm:$0xf]
    %v1195 = vld [vmem:[%s6 + $0xc] sm:$0xf]
    %v1196 = vld [vmem:[%s6 + $0x10] sm:$0xf]
    %v1197 = vld [vmem:[%s6 + $0x14] sm:$0xf]
    %v1198 = vld [vmem:[%s6 + $0x18] sm:$0xf]
    %v1199 = vld [vmem:[%s6 + $0x1c] sm:$0xf]
    %v1200 = vld [vmem:[%s6 + $0x20] sm:$0xf]
    %v1201 = vld [vmem:[%s6 + $0x24] sm:$0xf]
    %v1202 = vld [vmem:[%s6 + $0x28] sm:$0xf]
    %v1203 = vld [vmem:[%s6 + $0x2c] sm:$0xf]
    %v1204 = vld [vmem:[%s6 + $0x30] sm:$0xf]
    %v1205 = vld [vmem:[%s6 + $0x34] sm:$0xf]
    %v1206 = vld [vmem:[%s6 + $0x38] sm:$0xf]
    %v1207 = vld [vmem:[%s6 + $0x3c] sm:$0xf]
    %v1224 = vunpack.c.l.b16 %v1192
    %v1225 = vunpack.c.l.b16 %v1193
    %v1226 = vunpack.c.l.b16 %v1194
    %v1227 = vunpack.c.l.b16 %v1195
    %v1228 = vunpack.c.l.b16 %v1196
    %v1229 = vunpack.c.l.b16 %v1197
    %v1230 = vunpack.c.l.b16 %v1198
    %v1231 = vunpack.c.l.b16 %v1199
    %v1232 = vunpack.c.l.b16 %v1200
    %v1233 = vunpack.c.l.b16 %v1201
    %v1234 = vunpack.c.l.b16 %v1202
    %v1235 = vunpack.c.l.b16 %v1203
    %v1236 = vunpack.c.l.b16 %v1204
    %v1237 = vunpack.c.l.b16 %v1205
    %v1238 = vunpack.c.l.b16 %v1206
    %v1239 = vunpack.c.l.b16 %v1207
    %v1240 = vpack.c.b16 %v1225, %v1224
    %v1241 = vpack.c.b16 %v1227, %v1226
    %v1242 = vpack.c.b16 %v1229, %v1228
    %v1243 = vpack.c.b16 %v1231, %v1230
    %v1244 = vpack.c.b16 %v1233, %v1232
    %v1245 = vpack.c.b16 %v1235, %v1234
    %v1246 = vpack.c.b16 %v1237, %v1236
    %v1247 = vpack.c.b16 %v1239, %v1238
    %1256 = vmatpush.bf16.msra.mxu0 %v1247
    %1257 = vmatpush.bf16.msra.mxu0 %v1246
    %1258 = vmatpush.bf16.msra.mxu0 %v1245
    %1259 = vmatpush.bf16.msra.mxu0 %v1244
    %1260 = vmatpush.bf16.msra.mxu0 %v1243
    %1261 = vmatpush.bf16.msra.mxu0 %v1242
    %1262 = vmatpush.bf16.msra.mxu0 %v1241
    %1263 = vmatpush.bf16.msra.mxu0 %v1240
    %1264 = vmatmul.bf16.gmra.mxu0 %v1190
    %v1265 = vpop.f32.mrf.mxu0
    %v1266 = vadd.f32 %v1191, %v1265
    %v1267 = vpop.f32.mrf.mxu0
    %v1268 = vadd.f32 %v1191, %v1267
    %1269 = vdwg.mxu0
    %v1270 = vmax.f32 %v1266, 0.0
    %v1271 = vmax.f32 %v1268, 0.0
    %v1272 = vpack.c.bf16 %v1271, %v1270
    %v1273 = vld [vmem:[%s7] sm:$0xf]
    %v1274 = vld [vmem:[%s7 + $0x4] sm:$0xf]
    %v1275 = vld [vmem:[%s7 + $0x8] sm:$0xf]
    %v1276 = vld [vmem:[%s7 + $0xc] sm:$0xf]
    %v1277 = vld [vmem:[%s7 + $0x10] sm:$0xf]
    %v1278 = vld [vmem:[%s7 + $0x14] sm:$0xf]
    %v1279 = vld [vmem:[%s7 + $0x18] sm:$0xf]
    %v1280 = vld [vmem:[%s7 + $0x1c] sm:$0xf]
    %v1281 = vld [vmem:[%s8 + $0x6] ss:$0 sm:$0xff]
    %v1290 = vunpack.c.l.b16 %v1273
    %v1291 = vunpack.c.l.b16 %v1274
    %v1292 = vunpack.c.l.b16 %v1275
    %v1293 = vunpack.c.l.b16 %v1276
    %v1294 = vunpack.c.l.b16 %v1277
    %v1295 = vunpack.c.l.b16 %v1278
    %v1296 = vunpack.c.l.b16 %v1279
    %v1297 = vunpack.c.l.b16 %v1280
    %v1298 = vpack.c.b16 %v1291, %v1290
    %v1299 = vpack.c.b16 %v1293, %v1292
    %v1300 = vpack.c.b16 %v1295, %v1294
    %v1301 = vpack.c.b16 %v1297, %v1296
    %vm1306 = vcmask 523264
    %v1308 = vsel %vm1306, %v1272, 0
    %1310 = vmatpush.bf16.msra.mxu0 0
    %1311 = vmatpush.bf16.msra.mxu0 0
    %1312 = vmatpush.bf16.msra.mxu0 0
    %1313 = vmatpush.bf16.msra.mxu0 0
    %1314 = vmatpush.bf16.msra.mxu0 %v1301
    %1315 = vmatpush.bf16.msra.mxu0 %v1300
    %1316 = vmatpush.bf16.msra.mxu0 %v1299
    %1317 = vmatpush.bf16.msra.mxu0 %v1298
    %1318 = vmatmul.bf16.gmra.mxu0 %v1308
    %v1319 = vpop.f32.mrf.mxu0
    %v1320 = vadd.f32 %v1281, %v1319
    %v1321 = vpop.f32.mrf.mxu0
    %v1322 = vadd.f32 %v1281, %v1321
    %1323 = vdwg.mxu0
    %1324 = vst [vmem:[#allocation11] sm:$0xff] %v1320
    %1325 = vst [vmem:[#allocation11 + $0x8] sm:$0xff] %v1322
    // Predicated region
    $region58: #{tpu_custom_call.1} parent=1 // pred_check
      _
    $region59: #{tpu_custom_call.1} parent=1 // pred_check_branch
      %1327 = sbr.rel (0) target = $region61
    $region60: #{tpu_custom_call.1} parent=1 // pred_region
      %1329 = vsyncadd [#allocation4], 0
      %s1330 = sshll.u32 [#allocation11], 4
      %s1331 = int_to_ptr.vmem [resolvable:$true] %s1330
      %s1332 = sshll.u32 %s9, 4
      %s1333 = int_to_ptr.hbm [resolvable:$true] %s1332
      %1338 = dma.vmem_to_hbm [thread:$0]  %s1331, 256, %s1333, [#allocation4], 128, 128, 8
    $region61: #{tpu_custom_call.1} parent=1 // pred_fallthru
      _
    // Predicated region
    $region62: #{tpu_custom_call.1} parent=1 // pred_check
      _
    $region63: #{tpu_custom_call.1} parent=1 // pred_check_branch
      %1340 = sbr.rel (0) target = $region65
    $region64: #{tpu_custom_call.1} parent=1 // pred_region
      %1342 = dma.done [#allocation4], 256
    $region65: #{tpu_custom_call.1} parent=1 // pred_fallthru
      _
    %1343 = vsyncpa [#allocation3], 1
    %1344 = vsyncpa [#allocation6], 1
    %1345 = vsyncpa [#allocation9], 1
    %1346 = vsyncpa [#allocation4], 1

</llo_original>
